<compile_context>
chip_gen: v7x
topology: tpu7x:2x2x1
jax: 0.10.0
libtpu: 0.0.40
codegen_flags: <defaults>
</compile_context>

<pallas_src>
import jax
import jax.numpy as jnp
from jax.experimental import pallas as pl
from jax.experimental.pallas import tpu as pltpu

GAMMA = 0.01       # self.gamma
BETA = 1000.0      # partial_ot beta
N_ITER = 10        # partial_ot n_iter


def _pick_batch_block(B, max_bb=8):
    """Largest batch block that divides B (<= max_bb), else whole batch."""
    if B <= max_bb:
        return B
    for cand in range(max_bb, 0, -1):
        if B % cand == 0:
            return cand
    return B


# ---------------------------------------------------------------------------
# Fused kernel: per-batch partial-OT distance (accumulated over the grid) and
# the saliency mask (computed once; saliency/mask blocks are resident).
# ---------------------------------------------------------------------------
def _pot_mask_kernel(v_ref, a_ref, sal_ref, d_ref, mask_ref):
    b = pl.program_id(0)

    @pl.when(b == 0)
    def _init():
        d_ref[...] = jnp.zeros_like(d_ref)
        # mask = torch.where(saliency >= 0, 1, 0)
        mask_ref[...] = jnp.where(sal_ref[...] >= 0, 1, 0).astype(jnp.int32)

    # --- cost_routines[2]: C(x, y) = ||x - y||^2 / 2 -------------------------
    v = v_ref[...]                                   # (BB, M, D) native dtype
    a = a_ref[...]                                   # (BB, N, D) native dtype
    M = v.shape[1]
    N = a.shape[1]

    # Feed the MXU in the input dtype (bf16/f32 native, f32 accumulation).
    G = jnp.einsum("bmd,bnd->bmn", v, a,
                   preferred_element_type=jnp.float32)          # (BB, M, N)
    v32 = v.astype(jnp.float32)
    a32 = a.astype(jnp.float32)
    vn = jnp.sum(v32 * v32, axis=-1, keepdims=True)             # (BB, M, 1)
    an = jnp.sum(a32 * a32, axis=-1)[:, None, :]                # (BB, 1, N)
    C = 0.5 * vn + 0.5 * an - G                                 # (BB, M, N)

    # TODO(synk): for very large M*N, stream C/K over N-tiles (accumulate the
    # four scalars per tile) so only scalars persist in VMEM (v7x: 64 MiB).
    K = jnp.exp(C * (-1.0 / BETA))                              # (BB, M, N)

    # The only quantities the degenerate Sinkhorn recurrence ever touches.
    sum_K = jnp.sum(jnp.sum(K, axis=2), axis=1, keepdims=True)         # (BB, 1)
    row0_K = jnp.sum(K[:, 0, :], axis=1, keepdims=True)                # (BB, 1)
    col0_K = jnp.sum(K[:, :, 0], axis=1, keepdims=True)                # (BB, 1)
    dotCK = jnp.sum(jnp.sum(C * K, axis=2), axis=1, keepdims=True)     # (BB, 1)

    # --- partial_ot as a scalar recurrence (T == scale * K throughout) ------
    s = jnp.float32(min(M, N))     # only the last s of the reference survives
    aw = jnp.float32(1.0 / M)      # a = ones(M, 1) / M  -> a[0]
    bw = jnp.float32(1.0 / N)      # b = ones(N, 1) / N  -> b[0]
    base = s / sum_K               # scale of T0 = (s / sum(K)) * K
    scale = base
    for _ in range(N_ITER):        # 10 tiny (BB,1) ops, fully unrolled
        k_a = jnp.minimum(aw / (scale * row0_K), 1.0)
        k_b = jnp.minimum(bw / (k_a * scale * col0_K), 1.0)
        scale = base * k_a * k_b   # == (s / sum(T_old)) * k_a * k_b * scale_old

    d_batch = scale * dotCK        # (BB, 1): D = <C, T_final> per batch
    block_sum = jnp.sum(d_batch)

    # Accumulate the batch-sum into one resident output block; the wrapper
    # divides by B (== torch.mean(torch.stack(distance_list))).
    d_ref[...] = d_ref[...] + jnp.full(d_ref.shape, block_sum, d_ref.dtype)


def calc_pot_loss_and_mask(v_emb, a_emb, saliency):
    B, M, D = v_emb.shape
    N = a_emb.shape[1]
    BB = _pick_batch_block(B)      # several batches per grid step (MXU occupancy)
    nb = B // BB

    d_slab, mask = pl.pallas_call(
        _pot_mask_kernel,
        out_shape=(
            jax.ShapeDtypeStruct((8, 128), jnp.float32),   # sum of per-batch D
            jax.ShapeDtypeStruct((B, M), jnp.int32),       # saliency mask
        ),
        grid=(nb,),
        in_specs=[
            pl.BlockSpec((BB, M, D), lambda b: (b, 0, 0)),
            pl.BlockSpec((BB, N, D), lambda b: (b, 0, 0)),
            pl.BlockSpec((B, M), lambda b: (0, 0)),        # resident, fetched once
        ],
        out_specs=(
            pl.BlockSpec((8, 128), lambda b: (0, 0)),      # accumulator (resident)
            pl.BlockSpec((B, M), lambda b: (0, 0)),        # resident, written once
        ),
        compiler_params=pltpu.CompilerParams(
            # Accumulator output => batch-block axis must be "arbitrary".
            # (Raise vmem_limit_bytes here if M/N grow far beyond toy sizes.)
            dimension_semantics=("arbitrary",),
        ),
    )(v_emb, a_emb, saliency)

    pot_loss = d_slab[0, 0] / jnp.float32(B)   # mean over the batch
    return pot_loss, mask


# ---------------------------------------------------------------------------
# UMT.forward (training mode, config-built submodules == None)
# ---------------------------------------------------------------------------
def umt_forward(data, mode="train", training=True):
    # TODO(synk): video_enc / audio_enc / cross_enc / query_gen / query_dec /
    # pred_head come from external build_model(cfg) configs not present in the
    # reference module; with them None the embeddings are the raw inputs.
    v_emb = data["video"]
    a_emb = data["audio"]
    d_emb = v_emb  # r_emb / d_emb fall through to the raw video stream

    if training:
        pot_loss, mask = calc_pot_loss_and_mask(v_emb, a_emb, data["saliency"])
    else:
        # Trivial elementwise op; no dedicated kernel outside the fused path.
        mask = jnp.where(data["saliency"] >= 0, 1, 0).astype(jnp.int32)
        pot_loss = None

    output = dict(_avg_factor=mask.shape[0], _out=dict(meta=data.get("meta")))
    if training:
        # In the reference, pot_loss * gamma is added to every '*loss*' key
        # produced by pred_head; with no pred_head we expose it directly.
        output["pot_loss"] = pot_loss * GAMMA

    return output, mask, d_emb


if __name__ == "__main__":
    key = jax.random.PRNGKey(0)
    k_v, k_a, k_s = jax.random.split(key, 3)

    B, M, N, D = 2, 8, 8, 32
    data = dict(
        video=jax.random.normal(k_v, (B, M, D), jnp.float32),
        audio=jax.random.normal(k_a, (B, N, D), jnp.float32),
        saliency=jax.random.normal(k_s, (B, M), jnp.float32),
        meta=None,
    )

    output, mask, _ = umt_forward(data, mode="train", training=True)
    jax.block_until_ready(output["pot_loss"])
    jax.block_until_ready(mask)
    print("KERNEL_OK")
</pallas_src>

<mosaic_0001>
module attributes {stable_mosaic.version = 11 : i64} {
  func.func @_pot_mask_kernel(%arg0: i32, %arg1: memref<2x8x32xf32, #tpu.memory_space<vmem>>, %arg2: memref<2x8x32xf32, #tpu.memory_space<vmem>>, %arg3: memref<2x8xf32, #tpu.memory_space<vmem>>, %arg4: memref<8x128xf32, #tpu.memory_space<vmem>>, %arg5: memref<2x8xi32, #tpu.memory_space<vmem>>) attributes {dimension_semantics = [#tpu.dimension_semantics<arbitrary>], iteration_bounds = array<i64: 1>, scalar_prefetch = 0 : i64, scratch_operands = 0 : i64, tpu.core_type = #tpu.core_type<tc>, window_params = [{transform_indices = @transform_0, window_bounds = array<i64: 2, 8, 32>}, {transform_indices = @transform_1, window_bounds = array<i64: 2, 8, 32>}, {pipeline_mode = #tpu.pipeline_mode<synchronous>, transform_indices = @transform_2, window_bounds = array<i64: 2, 8>}, {pipeline_mode = #tpu.pipeline_mode<synchronous>, transform_indices = @transform_3, window_bounds = array<i64: 8, 128>}, {pipeline_mode = #tpu.pipeline_mode<synchronous>, transform_indices = @transform_4, window_bounds = array<i64: 2, 8>}]} {
    %c0_i32 = arith.constant 0 : i32
    %0 = arith.cmpi eq, %arg0, %c0_i32 : i32
    %1 = arith.extui %0 : i1 to i32
    %c0_i32_0 = arith.constant 0 : i32
    %2 = arith.cmpi ne, %1, %c0_i32_0 : i32
    scf.if %2 {
      %cst_63 = arith.constant 0.000000e+00 : f32
      %179 = vector.broadcast %cst_63 : f32 to vector<8x128xf32>
      %c0_64 = arith.constant 0 : index
      %c0_65 = arith.constant 0 : index
      %180 = vector.load %arg4[%c0_64, %c0_65] : memref<8x128xf32, #tpu.memory_space<vmem>>, vector<8x128xf32>
      tpu.vector_store %arg4[%c0_64, %c0_65], %179 {strides = array<i32>} : memref<8x128xf32, #tpu.memory_space<vmem>>, vector<8x128xf32>,
      %c0_66 = arith.constant 0 : index
      %c0_67 = arith.constant 0 : index
      %181 = vector.load %arg3[%c0_66, %c0_67] : memref<2x8xf32, #tpu.memory_space<vmem>>, vector<2x8xf32>
      %cst_68 = arith.constant 0.000000e+00 : f32
      %182 = vector.broadcast %cst_68 : f32 to vector<2x8xf32>
      %183 = arith.cmpf oge, %181, %182 : vector<2x8xf32>
      %c1_i32 = arith.constant 1 : i32
      %c0_i32_69 = arith.constant 0 : i32
      %184 = vector.broadcast %c1_i32 : i32 to vector<2x8xi32>
      %185 = vector.broadcast %c0_i32_69 : i32 to vector<2x8xi32>
      %186 = arith.select %183, %184, %185 : vector<2x8xi1>, vector<2x8xi32>
      %c0_70 = arith.constant 0 : index
      %c0_71 = arith.constant 0 : index
      %187 = vector.load %arg5[%c0_70, %c0_71] : memref<2x8xi32, #tpu.memory_space<vmem>>, vector<2x8xi32>
      tpu.vector_store %arg5[%c0_70, %c0_71], %186 {strides = array<i32>} : memref<2x8xi32, #tpu.memory_space<vmem>>, vector<2x8xi32>,
    } else {
    }
    %c0 = arith.constant 0 : index
    %c0_1 = arith.constant 0 : index
    %c0_2 = arith.constant 0 : index
    %3 = vector.load %arg1[%c0, %c0_1, %c0_2] : memref<2x8x32xf32, #tpu.memory_space<vmem>>, vector<2x8x32xf32>
    %c0_3 = arith.constant 0 : index
    %c0_4 = arith.constant 0 : index
    %c0_5 = arith.constant 0 : index
    %4 = vector.load %arg2[%c0_3, %c0_4, %c0_5] : memref<2x8x32xf32, #tpu.memory_space<vmem>>, vector<2x8x32xf32>
    "tpu.trace_start"() <{level = 10 : i32, message = "bmd,bnd->bmn"}> : () -> ()
    %cst = arith.constant dense<0.000000e+00> : vector<2x8x8xf32>
    %5 = tpu.matmul %3, %4, %cst {dimension_numbers = #tpu.dot_dimension_numbers<[2], [2], [1], [1], [0, 0, 0, 1, 1, 1], [0], [0]>} : vector<2x8x32xf32>, vector<2x8x32xf32>, vector<2x8x8xf32> -> vector<2x8x8xf32>
    "tpu.trace_stop"() : () -> ()
    %6 = arith.mulf %3, %3 : vector<2x8x32xf32>
    %cst_6 = arith.constant dense<0.000000e+00> : vector<2x8xf32>
    %7 = vector.multi_reduction <add>, %6, %cst_6 [2] : vector<2x8x32xf32> to vector<2x8xf32>
    %8 = vector.shape_cast %7 : vector<2x8xf32> to vector<2x8x1xf32>
    %9 = arith.mulf %4, %4 : vector<2x8x32xf32>
    %cst_7 = arith.constant dense<0.000000e+00> : vector<2x8xf32>
    %10 = vector.multi_reduction <add>, %9, %cst_7 [2] : vector<2x8x32xf32> to vector<2x8xf32>
    %11 = vector.shape_cast %10 : vector<2x8xf32> to vector<2x1x8xf32>
    %cst_8 = arith.constant 5.000000e-01 : f32
    %12 = vector.broadcast %cst_8 : f32 to vector<2x8x1xf32>
    %13 = arith.mulf %12, %8 : vector<2x8x1xf32>
    %cst_9 = arith.constant 5.000000e-01 : f32
    %14 = vector.broadcast %cst_9 : f32 to vector<2x1x8xf32>
    %15 = arith.mulf %14, %11 : vector<2x1x8xf32>
    %16 = vector.broadcast %13 : vector<2x8x1xf32> to vector<2x8x8xf32>
    %17 = vector.broadcast %15 : vector<2x1x8xf32> to vector<2x8x8xf32>
    %18 = arith.addf %16, %17 : vector<2x8x8xf32>
    %19 = arith.subf %18, %5 : vector<2x8x8xf32>
    %cst_10 = arith.constant -1.000000e-03 : f32
    %20 = vector.broadcast %cst_10 : f32 to vector<2x8x8xf32>
    %21 = arith.mulf %19, %20 : vector<2x8x8xf32>
    %22 = math.exp %21 : vector<2x8x8xf32>
    %cst_11 = arith.constant dense<0.000000e+00> : vector<2x8xf32>
    %23 = vector.multi_reduction <add>, %22, %cst_11 [2] : vector<2x8x8xf32> to vector<2x8xf32>
    %cst_12 = arith.constant dense<0.000000e+00> : vector<2xf32>
    %24 = vector.multi_reduction <add>, %23, %cst_12 [1] : vector<2x8xf32> to vector<2xf32>
    %25 = vector.shape_cast %24 : vector<2xf32> to vector<2x1xf32>
    %26 = vector.extract_strided_slice %22 {offsets = [0, 0, 0], sizes = [2, 1, 8], strides = [1, 1, 1]} : vector<2x8x8xf32> to vector<2x1x8xf32>
    %27 = vector.shape_cast %26 : vector<2x1x8xf32> to vector<2x8xf32>
    %cst_13 = arith.constant dense<0.000000e+00> : vector<2xf32>
    %28 = vector.multi_reduction <add>, %27, %cst_13 [1] : vector<2x8xf32> to vector<2xf32>
    %29 = vector.shape_cast %28 : vector<2xf32> to vector<2x1xf32>
    %30 = vector.extract_strided_slice %22 {offsets = [0, 0, 0], sizes = [2, 8, 1], strides = [1, 1, 1]} : vector<2x8x8xf32> to vector<2x8x1xf32>
    %31 = vector.shape_cast %30 : vector<2x8x1xf32> to vector<2x8xf32>
    %cst_14 = arith.constant dense<0.000000e+00> : vector<2xf32>
    %32 = vector.multi_reduction <add>, %31, %cst_14 [1] : vector<2x8xf32> to vector<2xf32>
    %33 = vector.shape_cast %32 : vector<2xf32> to vector<2x1xf32>
    %34 = arith.mulf %19, %22 : vector<2x8x8xf32>
    %cst_15 = arith.constant dense<0.000000e+00> : vector<2x8xf32>
    %35 = vector.multi_reduction <add>, %34, %cst_15 [2] : vector<2x8x8xf32> to vector<2x8xf32>
    %cst_16 = arith.constant dense<0.000000e+00> : vector<2xf32>
    %36 = vector.multi_reduction <add>, %35, %cst_16 [1] : vector<2x8xf32> to vector<2xf32>
    %37 = vector.shape_cast %36 : vector<2xf32> to vector<2x1xf32>
    %cst_17 = arith.constant 8.000000e+00 : f32
    %38 = vector.broadcast %cst_17 : f32 to vector<2x1xf32>
    %39 = arith.divf %38, %25 : vector<2x1xf32>
    %40 = arith.mulf %39, %29 : vector<2x1xf32>
    %cst_18 = arith.constant 1.250000e-01 : f32
    %41 = vector.broadcast %cst_18 : f32 to vector<2x1xf32>
    %42 = arith.divf %41, %40 : vector<2x1xf32>
    %cst_19 = arith.constant 1.000000e+00 : f32
    %43 = vector.broadcast %cst_19 : f32 to vector<2x1xf32>
    %44 = arith.minimumf %42, %43 : vector<2x1xf32>
    %45 = arith.mulf %44, %39 : vector<2x1xf32>
    %46 = arith.mulf %45, %33 : vector<2x1xf32>
    %cst_20 = arith.constant 1.250000e-01 : f32
    %47 = vector.broadcast %cst_20 : f32 to vector<2x1xf32>
    %48 = arith.divf %47, %46 : vector<2x1xf32>
    %cst_21 = arith.constant 1.000000e+00 : f32
    %49 = vector.broadcast %cst_21 : f32 to vector<2x1xf32>
    %50 = arith.minimumf %48, %49 : vector<2x1xf32>
    %51 = arith.mulf %39, %44 : vector<2x1xf32>
    %52 = arith.mulf %51, %50 : vector<2x1xf32>
    %53 = arith.mulf %52, %29 : vector<2x1xf32>
    %cst_22 = arith.constant 1.250000e-01 : f32
    %54 = vector.broadcast %cst_22 : f32 to vector<2x1xf32>
    %55 = arith.divf %54, %53 : vector<2x1xf32>
    %cst_23 = arith.constant 1.000000e+00 : f32
    %56 = vector.broadcast %cst_23 : f32 to vector<2x1xf32>
    %57 = arith.minimumf %55, %56 : vector<2x1xf32>
    %58 = arith.mulf %57, %52 : vector<2x1xf32>
    %59 = arith.mulf %58, %33 : vector<2x1xf32>
    %cst_24 = arith.constant 1.250000e-01 : f32
    %60 = vector.broadcast %cst_24 : f32 to vector<2x1xf32>
    %61 = arith.divf %60, %59 : vector<2x1xf32>
    %cst_25 = arith.constant 1.000000e+00 : f32
    %62 = vector.broadcast %cst_25 : f32 to vector<2x1xf32>
    %63 = arith.minimumf %61, %62 : vector<2x1xf32>
    %64 = arith.mulf %39, %57 : vector<2x1xf32>
    %65 = arith.mulf %64, %63 : vector<2x1xf32>
    %66 = arith.mulf %65, %29 : vector<2x1xf32>
    %cst_26 = arith.constant 1.250000e-01 : f32
    %67 = vector.broadcast %cst_26 : f32 to vector<2x1xf32>
    %68 = arith.divf %67, %66 : vector<2x1xf32>
    %cst_27 = arith.constant 1.000000e+00 : f32
    %69 = vector.broadcast %cst_27 : f32 to vector<2x1xf32>
    %70 = arith.minimumf %68, %69 : vector<2x1xf32>
    %71 = arith.mulf %70, %65 : vector<2x1xf32>
    %72 = arith.mulf %71, %33 : vector<2x1xf32>
    %cst_28 = arith.constant 1.250000e-01 : f32
    %73 = vector.broadcast %cst_28 : f32 to vector<2x1xf32>
    %74 = arith.divf %73, %72 : vector<2x1xf32>
    %cst_29 = arith.constant 1.000000e+00 : f32
    %75 = vector.broadcast %cst_29 : f32 to vector<2x1xf32>
    %76 = arith.minimumf %74, %75 : vector<2x1xf32>
    %77 = arith.mulf %39, %70 : vector<2x1xf32>
    %78 = arith.mulf %77, %76 : vector<2x1xf32>
    %79 = arith.mulf %78, %29 : vector<2x1xf32>
    %cst_30 = arith.constant 1.250000e-01 : f32
    %80 = vector.broadcast %cst_30 : f32 to vector<2x1xf32>
    %81 = arith.divf %80, %79 : vector<2x1xf32>
    %cst_31 = arith.constant 1.000000e+00 : f32
    %82 = vector.broadcast %cst_31 : f32 to vector<2x1xf32>
    %83 = arith.minimumf %81, %82 : vector<2x1xf32>
    %84 = arith.mulf %83, %78 : vector<2x1xf32>
    %85 = arith.mulf %84, %33 : vector<2x1xf32>
    %cst_32 = arith.constant 1.250000e-01 : f32
    %86 = vector.broadcast %cst_32 : f32 to vector<2x1xf32>
    %87 = arith.divf %86, %85 : vector<2x1xf32>
    %cst_33 = arith.constant 1.000000e+00 : f32
    %88 = vector.broadcast %cst_33 : f32 to vector<2x1xf32>
    %89 = arith.minimumf %87, %88 : vector<2x1xf32>
    %90 = arith.mulf %39, %83 : vector<2x1xf32>
    %91 = arith.mulf %90, %89 : vector<2x1xf32>
    %92 = arith.mulf %91, %29 : vector<2x1xf32>
    %cst_34 = arith.constant 1.250000e-01 : f32
    %93 = vector.broadcast %cst_34 : f32 to vector<2x1xf32>
    %94 = arith.divf %93, %92 : vector<2x1xf32>
    %cst_35 = arith.constant 1.000000e+00 : f32
    %95 = vector.broadcast %cst_35 : f32 to vector<2x1xf32>
    %96 = arith.minimumf %94, %95 : vector<2x1xf32>
    %97 = arith.mulf %96, %91 : vector<2x1xf32>
    %98 = arith.mulf %97, %33 : vector<2x1xf32>
    %cst_36 = arith.constant 1.250000e-01 : f32
    %99 = vector.broadcast %cst_36 : f32 to vector<2x1xf32>
    %100 = arith.divf %99, %98 : vector<2x1xf32>
    %cst_37 = arith.constant 1.000000e+00 : f32
    %101 = vector.broadcast %cst_37 : f32 to vector<2x1xf32>
    %102 = arith.minimumf %100, %101 : vector<2x1xf32>
    %103 = arith.mulf %39, %96 : vector<2x1xf32>
    %104 = arith.mulf %103, %102 : vector<2x1xf32>
    %105 = arith.mulf %104, %29 : vector<2x1xf32>
    %cst_38 = arith.constant 1.250000e-01 : f32
    %106 = vector.broadcast %cst_38 : f32 to vector<2x1xf32>
    %107 = arith.divf %106, %105 : vector<2x1xf32>
    %cst_39 = arith.constant 1.000000e+00 : f32
    %108 = vector.broadcast %cst_39 : f32 to vector<2x1xf32>
    %109 = arith.minimumf %107, %108 : vector<2x1xf32>
    %110 = arith.mulf %109, %104 : vector<2x1xf32>
    %111 = arith.mulf %110, %33 : vector<2x1xf32>
    %cst_40 = arith.constant 1.250000e-01 : f32
    %112 = vector.broadcast %cst_40 : f32 to vector<2x1xf32>
    %113 = arith.divf %112, %111 : vector<2x1xf32>
    %cst_41 = arith.constant 1.000000e+00 : f32
    %114 = vector.broadcast %cst_41 : f32 to vector<2x1xf32>
    %115 = arith.minimumf %113, %114 : vector<2x1xf32>
    %116 = arith.mulf %39, %109 : vector<2x1xf32>
    %117 = arith.mulf %116, %115 : vector<2x1xf32>
    %118 = arith.mulf %117, %29 : vector<2x1xf32>
    %cst_42 = arith.constant 1.250000e-01 : f32
    %119 = vector.broadcast %cst_42 : f32 to vector<2x1xf32>
    %120 = arith.divf %119, %118 : vector<2x1xf32>
    %cst_43 = arith.constant 1.000000e+00 : f32
    %121 = vector.broadcast %cst_43 : f32 to vector<2x1xf32>
    %122 = arith.minimumf %120, %121 : vector<2x1xf32>
    %123 = arith.mulf %122, %117 : vector<2x1xf32>
    %124 = arith.mulf %123, %33 : vector<2x1xf32>
    %cst_44 = arith.constant 1.250000e-01 : f32
    %125 = vector.broadcast %cst_44 : f32 to vector<2x1xf32>
    %126 = arith.divf %125, %124 : vector<2x1xf32>
    %cst_45 = arith.constant 1.000000e+00 : f32
    %127 = vector.broadcast %cst_45 : f32 to vector<2x1xf32>
    %128 = arith.minimumf %126, %127 : vector<2x1xf32>
    %129 = arith.mulf %39, %122 : vector<2x1xf32>
    %130 = arith.mulf %129, %128 : vector<2x1xf32>
    %131 = arith.mulf %130, %29 : vector<2x1xf32>
    %cst_46 = arith.constant 1.250000e-01 : f32
    %132 = vector.broadcast %cst_46 : f32 to vector<2x1xf32>
    %133 = arith.divf %132, %131 : vector<2x1xf32>
    %cst_47 = arith.constant 1.000000e+00 : f32
    %134 = vector.broadcast %cst_47 : f32 to vector<2x1xf32>
    %135 = arith.minimumf %133, %134 : vector<2x1xf32>
    %136 = arith.mulf %135, %130 : vector<2x1xf32>
    %137 = arith.mulf %136, %33 : vector<2x1xf32>
    %cst_48 = arith.constant 1.250000e-01 : f32
    %138 = vector.broadcast %cst_48 : f32 to vector<2x1xf32>
    %139 = arith.divf %138, %137 : vector<2x1xf32>
    %cst_49 = arith.constant 1.000000e+00 : f32
    %140 = vector.broadcast %cst_49 : f32 to vector<2x1xf32>
    %141 = arith.minimumf %139, %140 : vector<2x1xf32>
    %142 = arith.mulf %39, %135 : vector<2x1xf32>
    %143 = arith.mulf %142, %141 : vector<2x1xf32>
    %144 = arith.mulf %143, %29 : vector<2x1xf32>
    %cst_50 = arith.constant 1.250000e-01 : f32
    %145 = vector.broadcast %cst_50 : f32 to vector<2x1xf32>
    %146 = arith.divf %145, %144 : vector<2x1xf32>
    %cst_51 = arith.constant 1.000000e+00 : f32
    %147 = vector.broadcast %cst_51 : f32 to vector<2x1xf32>
    %148 = arith.minimumf %146, %147 : vector<2x1xf32>
    %149 = arith.mulf %148, %143 : vector<2x1xf32>
    %150 = arith.mulf %149, %33 : vector<2x1xf32>
    %cst_52 = arith.constant 1.250000e-01 : f32
    %151 = vector.broadcast %cst_52 : f32 to vector<2x1xf32>
    %152 = arith.divf %151, %150 : vector<2x1xf32>
    %cst_53 = arith.constant 1.000000e+00 : f32
    %153 = vector.broadcast %cst_53 : f32 to vector<2x1xf32>
    %154 = arith.minimumf %152, %153 : vector<2x1xf32>
    %155 = arith.mulf %39, %148 : vector<2x1xf32>
    %156 = arith.mulf %155, %154 : vector<2x1xf32>
    %157 = arith.mulf %156, %29 : vector<2x1xf32>
    %cst_54 = arith.constant 1.250000e-01 : f32
    %158 = vector.broadcast %cst_54 : f32 to vector<2x1xf32>
    %159 = arith.divf %158, %157 : vector<2x1xf32>
    %cst_55 = arith.constant 1.000000e+00 : f32
    %160 = vector.broadcast %cst_55 : f32 to vector<2x1xf32>
    %161 = arith.minimumf %159, %160 : vector<2x1xf32>
    %162 = arith.mulf %161, %156 : vector<2x1xf32>
    %163 = arith.mulf %162, %33 : vector<2x1xf32>
    %cst_56 = arith.constant 1.250000e-01 : f32
    %164 = vector.broadcast %cst_56 : f32 to vector<2x1xf32>
    %165 = arith.divf %164, %163 : vector<2x1xf32>
    %cst_57 = arith.constant 1.000000e+00 : f32
    %166 = vector.broadcast %cst_57 : f32 to vector<2x1xf32>
    %167 = arith.minimumf %165, %166 : vector<2x1xf32>
    %168 = arith.mulf %39, %161 : vector<2x1xf32>
    %169 = arith.mulf %168, %167 : vector<2x1xf32>
    %170 = arith.mulf %169, %37 : vector<2x1xf32>
    %171 = vector.shape_cast %170 : vector<2x1xf32> to vector<1x2x1xf32>
    %cst_58 = arith.constant dense<0.000000e+00> : vector<1xf32>
    %172 = vector.multi_reduction <add>, %171, %cst_58 [1, 2] : vector<1x2x1xf32> to vector<1xf32>
    %173 = vector.shape_cast %172 : vector<1xf32> to vector<1x1x1xf32>
    %174 = vector.extract %173[0, 0, 0] : f32 from vector<1x1x1xf32>
    %c0_59 = arith.constant 0 : index
    %c0_60 = arith.constant 0 : index
    %175 = vector.load %arg4[%c0_59, %c0_60] : memref<8x128xf32, #tpu.memory_space<vmem>>, vector<8x128xf32>
    %176 = vector.broadcast %174 : f32 to vector<8x128xf32>
    %177 = arith.addf %175, %176 : vector<8x128xf32>
    %c0_61 = arith.constant 0 : index
    %c0_62 = arith.constant 0 : index
    %178 = vector.load %arg4[%c0_61, %c0_62] : memref<8x128xf32, #tpu.memory_space<vmem>>, vector<8x128xf32>
    tpu.vector_store %arg4[%c0_61, %c0_62], %177 {strides = array<i32>} : memref<8x128xf32, #tpu.memory_space<vmem>>, vector<8x128xf32>,
    return
  }
  func.func @transform_0(%arg0: i32) -> (i32, i32, i32) {
    %c0_i32 = arith.constant 0 : i32
    %c0_i32_0 = arith.constant 0 : i32
    %c0_i32_1 = arith.constant 0 : i32
    return %arg0, %c0_i32, %c0_i32_0 : i32, i32, i32
  }
  func.func @transform_1(%arg0: i32) -> (i32, i32, i32) {
    %c0_i32 = arith.constant 0 : i32
    %c0_i32_0 = arith.constant 0 : i32
    %c0_i32_1 = arith.constant 0 : i32
    return %arg0, %c0_i32, %c0_i32_0 : i32, i32, i32
  }
  func.func @transform_2(%arg0: i32) -> (i32, i32) {
    %c0_i32 = arith.constant 0 : i32
    %c0_i32_0 = arith.constant 0 : i32
    %c0_i32_1 = arith.constant 0 : i32
    return %c0_i32, %c0_i32_0 : i32, i32
  }
  func.func @transform_3(%arg0: i32) -> (i32, i32) {
    %c0_i32 = arith.constant 0 : i32
    %c0_i32_0 = arith.constant 0 : i32
    %c0_i32_1 = arith.constant 0 : i32
    return %c0_i32, %c0_i32_0 : i32, i32
  }
  func.func @transform_4(%arg0: i32) -> (i32, i32) {
    %c0_i32 = arith.constant 0 : i32
    %c0_i32_0 = arith.constant 0 : i32
    %c0_i32_1 = arith.constant 0 : i32
    return %c0_i32, %c0_i32_0 : i32, i32
  }
}

</mosaic_0001>

<llo_original>
// kernel: tpu_custom_call.1
$region0: #{tpu_custom_call.1}
  #allocation0 [shape = 'u32[]', space=smem, size = 0x4, offset = 0x4, fixed_abs, tag = 'smem constant byte address 0x4 - core index']
  #allocation1 [shape = 'u32[144,128]{1,0:T(1,128)}', space=vmem, size = 0x12000, scoped, tag = 'internal scratch']
  %s0 = inlined_call_operand.hbm [shape: f32[2,8,32], index: 0, kind: input, shape index: {}]
  %s1 = inlined_call_operand.hbm [shape: f32[2,8,32], index: 1, kind: input, shape index: {}]
  %s2 = inlined_call_operand.vmem [shape: f32[2,8], index: 2, kind: input, shape index: {}]
  %s3 = inlined_call_operand.hbm [shape: f32[8,128], index: 3, kind: output, shape index: {0}]
  %s4 = inlined_call_operand.hbm [shape: s32[2,8], index: 4, kind: output, shape index: {1}]
  %5 = xla_tuple %s3, %s4
  %s6 = sld [smem:[#allocation0]]
  $region42: #{tpu_custom_call.1} parent=0
    _
  %s8 = ssub.s32 1, %s6
  %s9 = scalar_select 0, %s8, %s6
  $region1: #{tpu_custom_call.1} parent=0
    #allocation2 [shape = 'u8[8192]{0}', space=vmem, size = 0x2000, scoped, tag = 'input window, operand 0, single buffered']
    #allocation3 [shape = 's32[1]{0}', space=sflag, size = 0x4, scoped, tag = 'scoped memory for tpu_custom_call.1']
    #allocation4 [shape = 's32[1]{0}', space=sflag, size = 0x4, scoped, tag = 'scoped memory for tpu_custom_call.1']
    #allocation5 [shape = 'u8[8192]{0}', space=vmem, size = 0x2000, scoped, tag = 'input window, operand 1, single buffered']
    #allocation6 [shape = 's32[1]{0}', space=sflag, size = 0x4, scoped, tag = 'scoped memory for tpu_custom_call.1']
    #allocation7 [shape = 'u8[4096]{0}', space=vmem, size = 0x1000, scoped, tag = 'output window, operand 0, single buffered']
    #allocation8 [shape = 'u8[1024]{0}', space=vmem, size = 0x400, scoped, tag = 'output window, operand 1, single buffered']
    #allocation9 [shape = 's32[1]{0}', space=sflag, size = 0x4, scoped, tag = 'scoped memory for tpu_custom_call.1']
    %10 = vsyncpa [#allocation3], 0
    %11 = vsyncpa [#allocation6], 0
    %12 = vsyncpa [#allocation4], 0
    %13 = vsyncpa [#allocation9], 0
    // Predicated region
    $region2: #{tpu_custom_call.1} parent=1 // pred_check
      _
    $region3: #{tpu_custom_call.1} parent=1 // pred_check_branch
      %15 = sbr.rel (0) target = $region5
    $region4: #{tpu_custom_call.1} parent=1 // pred_region
      %s17 = ssub.s32 256, 256
      %18 = vsyncadd [#allocation3], %s17
      %s19 = sshll.u32 [#allocation2], 4
      %s20 = int_to_ptr.vmem [resolvable:$true] %s19
      %25 = dma.hbm_to_vmem [thread:$0]  %s0, 256, %s20, [#allocation3], 128, 128, 8
    $region5: #{tpu_custom_call.1} parent=1 // pred_fallthru
      _
    // Predicated region
    $region6: #{tpu_custom_call.1} parent=1 // pred_check
      _
    $region7: #{tpu_custom_call.1} parent=1 // pred_check_branch
      %27 = sbr.rel (0) target = $region9
    $region8: #{tpu_custom_call.1} parent=1 // pred_region
      %s29 = ssub.s32 256, 256
      %30 = vsyncadd [#allocation6], %s29
      %s31 = sshll.u32 [#allocation5], 4
      %s32 = int_to_ptr.vmem [resolvable:$true] %s31
      %37 = dma.hbm_to_vmem [thread:$0]  %s1, 256, %s32, [#allocation6], 128, 128, 8
    $region9: #{tpu_custom_call.1} parent=1 // pred_fallthru
      _
    // Predicated region
    $region10: #{tpu_custom_call.1} parent=1 // pred_check
      _
    $region11: #{tpu_custom_call.1} parent=1 // pred_check_branch
      %39 = sbr.rel (0) target = $region13
    $region12: #{tpu_custom_call.1} parent=1 // pred_region
      _
    $region13: #{tpu_custom_call.1} parent=1 // pred_fallthru
      _
    // Predicated region
    $region14: #{tpu_custom_call.1} parent=1 // pred_check
      _
    $region15: #{tpu_custom_call.1} parent=1 // pred_check_branch
      %41 = sbr.rel (0) target = $region17
    $region16: #{tpu_custom_call.1} parent=1 // pred_region
      %42 = dma.done [#allocation3], 256
    $region17: #{tpu_custom_call.1} parent=1 // pred_fallthru
      _
    // Predicated region
    $region18: #{tpu_custom_call.1} parent=1 // pred_check
      _
    $region19: #{tpu_custom_call.1} parent=1 // pred_check_branch
      %44 = sbr.rel (0) target = $region21
    $region20: #{tpu_custom_call.1} parent=1 // pred_region
      %45 = dma.done [#allocation6], 256
    $region21: #{tpu_custom_call.1} parent=1 // pred_fallthru
      _
    %p46 = scmp.eq.s32.totalorder 0, 0
    // Predicated region
    $region22: #{tpu_custom_call.1} parent=1 // pred_check
      %p47 = pneg %p46
    $region23: #{tpu_custom_call.1} parent=1 // pred_check_branch
      %49 = sbr.rel (%p47) target = $region25
    $region24: #{tpu_custom_call.1} parent=1 // pred_region
      %50 = vst [vmem:[#allocation7] sm:$0xff] 0.0
      %v51 = vld [vmem:[%s2] sm:$0x3]
      %vm52 = vcmp.ge.f32.partialorder %v51, 0.0
      %v53 = vsel %vm52, 1, 0
      %vm54 = vcmask 58368
      %55 = vst.msk [vmem:[#allocation8] sm:$0x3] %vm54, %v53
    $region25: #{tpu_custom_call.1} parent=1 // pred_fallthru
      _
    %v56 = vld [vmem:[#allocation2] sm:$0xff]
    %v57 = vld [vmem:[#allocation2 + $0x8] sm:$0xff]
    %v58 = vld [vmem:[#allocation5] sm:$0xff]
    %v59 = vld [vmem:[#allocation5 + $0x8] sm:$0xff]
    %vm60 = vcmask 261120
    %v62 = vsel %vm60, %v56, 0
    %v65 = vsel %vm60, %v58, 0
    %67 = vmatprep.subr.mxu0 0.0
    %68 = vmatpush1.xpose.msra.mxu0 %v65
    %69 = vmatprep.subr.mxu0 0.0
    %70 = vmatpush1.xpose.msra.mxu0 0.0
    %71 = vmatprep.subr.mxu0 0.0
    %72 = vmatpush1.xpose.msra.mxu0 0.0
    %73 = vmatprep.subr.mxu0 0.0
    %74 = vmatpush1.xpose.msra.mxu0 0.0
    %75 = vmatprep.subr.mxu0 0.0
    %76 = vmatpush1.xpose.msra.mxu0 0.0
    %77 = vmatprep.subr.mxu0 0.0
    %78 = vmatpush1.xpose.msra.mxu0 0.0
    %79 = vmatprep.subr.mxu0 0.0
    %80 = vmatpush1.xpose.msra.mxu0 0.0
    %81 = vmatprep.subr.mxu0 0.0
    %82 = vmatpush1.xpose.msra.mxu0 0.0
    %83 = vmatprep.subr.mxu0 0.0
    %84 = vmatpush1.xpose.msra.mxu0 0.0
    %85 = vmatprep.subr.mxu0 0.0
    %86 = vmatpush1.xpose.msra.mxu0 0.0
    %87 = vmatprep.subr.mxu0 0.0
    %88 = vmatpush1.xpose.msra.mxu0 0.0
    %89 = vmatprep.subr.mxu0 0.0
    %90 = vmatpush1.xpose.msra.mxu0 0.0
    %91 = vmatprep.subr.mxu0 0.0
    %92 = vmatpush1.xpose.msra.mxu0 0.0
    %93 = vmatprep.subr.mxu0 0.0
    %94 = vmatpush1.xpose.msra.mxu0 0.0
    %95 = vmatprep.subr.mxu0 0.0
    %96 = vmatpush1.xpose.msra.mxu0 0.0
    %97 = vmatprep.subr.mxu0 0.0
    %98 = vmatpush1.xpose.msra.mxu0 0.0
    %99 = vmatprep.subr.mxu0 0.0
    %100 = vmatpush1.xpose.msra.mxu0 0.0
    %101 = vmatprep.subr.mxu0 0.0
    %102 = vmatpush1.xpose.msra.mxu0 0.0
    %103 = vmatprep.subr.mxu0 0.0
    %104 = vmatpush1.xpose.msra.mxu0 0.0
    %105 = vmatprep.subr.mxu0 0.0
    %106 = vmatpush1.xpose.msra.mxu0 0.0
    %107 = vmatprep.subr.mxu0 0.0
    %108 = vmatpush1.xpose.msra.mxu0 0.0
    %109 = vmatprep.subr.mxu0 0.0
    %110 = vmatpush1.xpose.msra.mxu0 0.0
    %111 = vmatprep.subr.mxu0 0.0
    %112 = vmatpush1.xpose.msra.mxu0 0.0
    %113 = vmatprep.subr.mxu0 0.0
    %114 = vmatpush1.xpose.msra.mxu0 0.0
    %115 = vmatprep.subr.mxu0 0.0
    %116 = vmatpush1.xpose.msra.mxu0 0.0
    %117 = vmatprep.subr.mxu0 0.0
    %118 = vmatpush1.xpose.msra.mxu0 0.0
    %119 = vmatprep.subr.mxu0 0.0
    %120 = vmatpush1.xpose.msra.mxu0 0.0
    %121 = vmatprep.subr.mxu0 0.0
    %122 = vmatpush1.xpose.msra.mxu0 0.0
    %123 = vmatprep.subr.mxu0 0.0
    %124 = vmatpush1.xpose.msra.mxu0 0.0
    %125 = vmatprep.subr.mxu0 0.0
    %126 = vmatpush1.xpose.msra.mxu0 0.0
    %127 = vmatprep.subr.mxu0 0.0
    %128 = vmatpush1.xpose.msra.mxu0 0.0
    %129 = vmatprep.subr.mxu0 0.0
    %130 = vmatpush1.xpose.msra.mxu0 0.0
    %131 = vmatprep.mubr.f32.mxu0 0.0
    %132 = vmatmul.mubr.f32.gmra.mrb[0].mxu0 %v62
    %v133 = vpop.f32.mrb[0].mxu0
    %v134 = vadd.f32 0.0, %v133
    %v135 = vpop.f32.mrb[0].mxu0
    %136 = vdwg.mxu0
    %v138 = vsel %vm60, %v57, 0
    %v141 = vsel %vm60, %v59, 0
    %143 = vmatprep.subr.mxu0 0.0
    %144 = vmatpush1.xpose.msra.mxu0 %v141
    %145 = vmatprep.subr.mxu0 0.0
    %146 = vmatpush1.xpose.msra.mxu0 0.0
    %147 = vmatprep.subr.mxu0 0.0
    %148 = vmatpush1.xpose.msra.mxu0 0.0
    %149 = vmatprep.subr.mxu0 0.0
    %150 = vmatpush1.xpose.msra.mxu0 0.0
    %151 = vmatprep.subr.mxu0 0.0
    %152 = vmatpush1.xpose.msra.mxu0 0.0
    %153 = vmatprep.subr.mxu0 0.0
    %154 = vmatpush1.xpose.msra.mxu0 0.0
    %155 = vmatprep.subr.mxu0 0.0
    %156 = vmatpush1.xpose.msra.mxu0 0.0
    %157 = vmatprep.subr.mxu0 0.0
    %158 = vmatpush1.xpose.msra.mxu0 0.0
    %159 = vmatprep.subr.mxu0 0.0
    %160 = vmatpush1.xpose.msra.mxu0 0.0
    %161 = vmatprep.subr.mxu0 0.0
    %162 = vmatpush1.xpose.msra.mxu0 0.0
    %163 = vmatprep.subr.mxu0 0.0
    %164 = vmatpush1.xpose.msra.mxu0 0.0
    %165 = vmatprep.subr.mxu0 0.0
    %166 = vmatpush1.xpose.msra.mxu0 0.0
    %167 = vmatprep.subr.mxu0 0.0
    %168 = vmatpush1.xpose.msra.mxu0 0.0
    %169 = vmatprep.subr.mxu0 0.0
    %170 = vmatpush1.xpose.msra.mxu0 0.0
    %171 = vmatprep.subr.mxu0 0.0
    %172 = vmatpush1.xpose.msra.mxu0 0.0
    %173 = vmatprep.subr.mxu0 0.0
    %174 = vmatpush1.xpose.msra.mxu0 0.0
    %175 = vmatprep.subr.mxu0 0.0
    %176 = vmatpush1.xpose.msra.mxu0 0.0
    %177 = vmatprep.subr.mxu0 0.0
    %178 = vmatpush1.xpose.msra.mxu0 0.0
    %179 = vmatprep.subr.mxu0 0.0
    %180 = vmatpush1.xpose.msra.mxu0 0.0
    %181 = vmatprep.subr.mxu0 0.0
    %182 = vmatpush1.xpose.msra.mxu0 0.0
    %183 = vmatprep.subr.mxu0 0.0
    %184 = vmatpush1.xpose.msra.mxu0 0.0
    %185 = vmatprep.subr.mxu0 0.0
    %186 = vmatpush1.xpose.msra.mxu0 0.0
    %187 = vmatprep.subr.mxu0 0.0
    %188 = vmatpush1.xpose.msra.mxu0 0.0
    %189 = vmatprep.subr.mxu0 0.0
    %190 = vmatpush1.xpose.msra.mxu0 0.0
    %191 = vmatprep.subr.mxu0 0.0
    %192 = vmatpush1.xpose.msra.mxu0 0.0
    %193 = vmatprep.subr.mxu0 0.0
    %194 = vmatpush1.xpose.msra.mxu0 0.0
    %195 = vmatprep.subr.mxu0 0.0
    %196 = vmatpush1.xpose.msra.mxu0 0.0
    %197 = vmatprep.subr.mxu0 0.0
    %198 = vmatpush1.xpose.msra.mxu0 0.0
    %199 = vmatprep.subr.mxu0 0.0
    %200 = vmatpush1.xpose.msra.mxu0 0.0
    %201 = vmatprep.subr.mxu0 0.0
    %202 = vmatpush1.xpose.msra.mxu0 0.0
    %203 = vmatprep.subr.mxu0 0.0
    %204 = vmatpush1.xpose.msra.mxu0 0.0
    %205 = vmatprep.subr.mxu0 0.0
    %206 = vmatpush1.xpose.msra.mxu0 0.0
    %207 = vmatprep.mubr.f32.mxu0 0.0
    %208 = vmatmul.mubr.f32.gmra.mrb[0].mxu0 %v138
    %v209 = vpop.f32.mrb[0].mxu0
    %v210 = vadd.f32 0.0, %v209
    %v211 = vpop.f32.mrb[0].mxu0
    %212 = vdwg.mxu0
    %v213 = vmul.f32 %v56, %v56
    %v214 = vmul.f32 %v57, %v57
    %v215 = vsel %vm60, %v213, 0.0
    %216 = vadd.xlane.f32.xlu0 %v215
    %v217 = vpop.xlane.xlu0 %216
    %v218 = vsel %vm60, %v214, 0.0
    %219 = vadd.xlane.f32.xlu0 %v218
    %v220 = vpop.xlane.xlu0 %219
    %v221 = vmul.f32 %v58, %v58
    %v222 = vmul.f32 %v59, %v59
    %v223 = vsel %vm60, %v221, 0.0
    %224 = vadd.xlane.f32.xlu0 %v223
    %v225 = vpop.xlane.xlu0 %224
    %v226 = vsel %vm60, %v222, 0.0
    %227 = vadd.xlane.f32.xlu0 %v226
    %v228 = vpop.xlane.xlu0 %227
    %v229 = vmul.f32 %v217, 0.5
    %v230 = vmul.f32 %v220, 0.5
    %v231 = vmul.f32 %v225, 0.5
    %v232 = vmul.f32 %v228, 0.5
    %v235 = vlaneseq
    %v236 = vand.u32 %v235, 127
    %v237 = vlaneseq
    %v238 = vshrl.u32 %v237, 7
    %v239 = vsub.s32 %v236, %v238
    %v240 = vrot.slane %v231, %v239
    %v241 = vlaneseq
    %v242 = vshrl.u32 %v241, 7
    %v243 = vsub.s32 %v236, %v242
    %v244 = vrot.slane %v232, %v243
    %vm245 = vcmask 1041409
    %vm246 = vcmask 1042434
    %v247 = vsel %vm246, %v240, %v240
    %vm248 = vcmask 1043459
    %v249 = vsel %vm248, %v240, %v247
    %vm250 = vcmask 1044484
    %v251 = vsel %vm250, %v240, %v249
    %vm252 = vcmask 1045509
    %v253 = vsel %vm252, %v240, %v251
    %vm254 = vcmask 1046534
    %v255 = vsel %vm254, %v240, %v253
    %vm256 = vcmask 1047559
    %v257 = vsel %vm256, %v240, %v255
    %v258 = vsel %vm246, %v244, %v244
    %v259 = vsel %vm248, %v244, %v258
    %v260 = vsel %vm250, %v244, %v259
    %v261 = vsel %vm252, %v244, %v260
    %v262 = vsel %vm254, %v244, %v261
    %v263 = vsel %vm256, %v244, %v262
    %v266 = vadd.f32 %v229, %v257
    %v267 = vadd.f32 %v230, %v263
    %v268 = vsub.f32 %v266, %v134
    %v269 = vsub.f32 %v267, %v210
    %v270 = vmul.f32 %v268, -0.001
    %v271 = vmul.f32 %v269, -0.001
    %v272 = vmul.f32 %v270, 1.442695
    %v273 = vpow.pop %v272
    %v274 = vmul.f32 %v271, 1.442695
    %v275 = vpow.pop %v274
    %vm276 = vcmask 64512
    %v277 = vsel %vm276, %v273, 0.0
    %278 = vadd.xlane.f32.xlu0 %v277
    %v279 = vpop.xlane.xlu0 %278
    %v280 = vsel %vm276, %v275, 0.0
    %281 = vadd.xlane.f32.xlu0 %v280
    %v282 = vpop.xlane.xlu0 %281
    %v285 = vlaneseq
    %v286 = vshrl.u32 %v285, 7
    %v287 = vsub.s32 %v236, %v286
    %v288 = vrot.slane %v279, %v287
    %v289 = vlaneseq
    %v290 = vshrl.u32 %v289, 7
    %v291 = vsub.s32 %v236, %v290
    %v292 = vrot.slane %v282, %v291
    %v293 = vsel %vm245, %v292, %v288
    %vm295 = vcmask 58368
    %v296 = vsel %vm295, %v293, 0.0
    %297 = vadd.xlane.f32.xlu0 %v296
    %v298 = vpop.xlane.xlu0 %297
    %v301 = vrot.slane %v275, 7
    %v302 = vsel %vm245, %v301, %v273
    %v304 = vsel %vm295, %v302, 0.0
    %305 = vadd.xlane.f32.xlu0 %v304
    %v306 = vpop.xlane.xlu0 %305
    %307 = vset.pattern.permute.xlu0 0
    %308 = vperm.xlu0 %307, %v273
    %v309 = vpop.permute.xlu0 %308
    %310 = vset.pattern.permute.xlu0 0
    %311 = vperm.xlu0 %310, %v275
    %v312 = vpop.permute.xlu0 %311
    %v313 = vlaneseq
    %v314 = vshrl.u32 %v313, 7
    %v315 = vsub.s32 %v236, %v314
    %v316 = vrot.slane %v309, %v315
    %v317 = vlaneseq
    %v318 = vshrl.u32 %v317, 7
    %v319 = vsub.s32 %v236, %v318
    %v320 = vrot.slane %v312, %v319
    %v321 = vsel %vm245, %v320, %v316
    %v323 = vsel %vm295, %v321, 0.0
    %324 = vadd.xlane.f32.xlu0 %v323
    %v325 = vpop.xlane.xlu0 %324
    %v326 = vmul.f32 %v268, %v273
    %v327 = vmul.f32 %v269, %v275
    %v328 = vsel %vm276, %v326, 0.0
    %329 = vadd.xlane.f32.xlu0 %v328
    %v330 = vpop.xlane.xlu0 %329
    %v331 = vsel %vm276, %v327, 0.0
    %332 = vadd.xlane.f32.xlu0 %v331
    %v333 = vpop.xlane.xlu0 %332
    %v336 = vlaneseq
    %v337 = vshrl.u32 %v336, 7
    %v338 = vsub.s32 %v236, %v337
    %v339 = vrot.slane %v330, %v338
    %v340 = vlaneseq
    %v341 = vshrl.u32 %v340, 7
    %v342 = vsub.s32 %v236, %v341
    %v343 = vrot.slane %v333, %v342
    %v344 = vsel %vm245, %v343, %v339
    %v346 = vsel %vm295, %v344, 0.0
    %347 = vadd.xlane.f32.xlu0 %v346
    %v348 = vpop.xlane.xlu0 %347
    %v349 = vrcp.pop %v298
    %v350 = vmul.f32 8.0, %v349
    %v351 = vmul.f32 %v350, %v306
    %v352 = vrcp.pop %v351
    %v353 = vmul.f32 0.125, %v352
    %v354 = vmin.f32 %v353, 1.0
    %v355 = vmul.f32 %v354, %v350
    %v356 = vmul.f32 %v355, %v325
    %v357 = vrcp.pop %v356
    %v358 = vmul.f32 0.125, %v357
    %v359 = vmin.f32 %v358, 1.0
    %v360 = vmul.f32 %v355, %v359
    %v361 = vmul.f32 %v360, %v306
    %v362 = vrcp.pop %v361
    %v363 = vmul.f32 0.125, %v362
    %v364 = vmin.f32 %v363, 1.0
    %v365 = vmul.f32 %v364, %v360
    %v366 = vmul.f32 %v365, %v325
    %v367 = vrcp.pop %v366
    %v368 = vmul.f32 0.125, %v367
    %v369 = vmin.f32 %v368, 1.0
    %v370 = vmul.f32 %v350, %v364
    %v371 = vmul.f32 %v370, %v369
    %v372 = vmul.f32 %v371, %v306
    %v373 = vrcp.pop %v372
    %v374 = vmul.f32 0.125, %v373
    %v375 = vmin.f32 %v374, 1.0
    %v376 = vmul.f32 %v375, %v371
    %v377 = vmul.f32 %v376, %v325
    %v378 = vrcp.pop %v377
    %v379 = vmul.f32 0.125, %v378
    %v380 = vmin.f32 %v379, 1.0
    %v381 = vmul.f32 %v350, %v375
    %v382 = vmul.f32 %v381, %v380
    %v383 = vmul.f32 %v382, %v306
    %v384 = vrcp.pop %v383
    %v385 = vmul.f32 0.125, %v384
    %v386 = vmin.f32 %v385, 1.0
    %v387 = vmul.f32 %v386, %v382
    %v388 = vmul.f32 %v387, %v325
    %v389 = vrcp.pop %v388
    %v390 = vmul.f32 0.125, %v389
    %v391 = vmin.f32 %v390, 1.0
    %v392 = vmul.f32 %v350, %v386
    %v393 = vmul.f32 %v392, %v391
    %v394 = vmul.f32 %v393, %v306
    %v395 = vrcp.pop %v394
    %v396 = vmul.f32 0.125, %v395
    %v397 = vmin.f32 %v396, 1.0
    %v398 = vmul.f32 %v397, %v393
    %v399 = vmul.f32 %v398, %v325
    %v400 = vrcp.pop %v399
    %v401 = vmul.f32 0.125, %v400
    %v402 = vmin.f32 %v401, 1.0
    %v403 = vmul.f32 %v350, %v397
    %v404 = vmul.f32 %v403, %v402
    %v405 = vmul.f32 %v404, %v306
    %v406 = vrcp.pop %v405
    %v407 = vmul.f32 0.125, %v406
    %v408 = vmin.f32 %v407, 1.0
    %v409 = vmul.f32 %v408, %v404
    %v410 = vmul.f32 %v409, %v325
    %v411 = vrcp.pop %v410
    %v412 = vmul.f32 0.125, %v411
    %v413 = vmin.f32 %v412, 1.0
    %v414 = vmul.f32 %v350, %v408
    %v415 = vmul.f32 %v414, %v413
    %v416 = vmul.f32 %v415, %v306
    %v417 = vrcp.pop %v416
    %v418 = vmul.f32 0.125, %v417
    %v419 = vmin.f32 %v418, 1.0
    %v420 = vmul.f32 %v419, %v415
    %v421 = vmul.f32 %v420, %v325
    %v422 = vrcp.pop %v421
    %v423 = vmul.f32 0.125, %v422
    %v424 = vmin.f32 %v423, 1.0
    %v425 = vmul.f32 %v350, %v419
    %v426 = vmul.f32 %v425, %v424
    %v427 = vmul.f32 %v426, %v306
    %v428 = vrcp.pop %v427
    %v429 = vmul.f32 0.125, %v428
    %v430 = vmin.f32 %v429, 1.0
    %v431 = vmul.f32 %v430, %v426
    %v432 = vmul.f32 %v431, %v325
    %v433 = vrcp.pop %v432
    %v434 = vmul.f32 0.125, %v433
    %v435 = vmin.f32 %v434, 1.0
    %v436 = vmul.f32 %v350, %v430
    %v437 = vmul.f32 %v436, %v435
    %v438 = vmul.f32 %v437, %v306
    %v439 = vrcp.pop %v438
    %v440 = vmul.f32 0.125, %v439
    %v441 = vmin.f32 %v440, 1.0
    %v442 = vmul.f32 %v441, %v437
    %v443 = vmul.f32 %v442, %v325
    %v444 = vrcp.pop %v443
    %v445 = vmul.f32 0.125, %v444
    %v446 = vmin.f32 %v445, 1.0
    %v447 = vmul.f32 %v350, %v441
    %v448 = vmul.f32 %v447, %v446
    %v449 = vmul.f32 %v448, %v306
    %v450 = vrcp.pop %v449
    %v451 = vmul.f32 0.125, %v450
    %v452 = vmin.f32 %v451, 1.0
    %v453 = vmul.f32 %v452, %v448
    %v454 = vmul.f32 %v453, %v325
    %v455 = vrcp.pop %v454
    %v456 = vmul.f32 0.125, %v455
    %v457 = vmin.f32 %v456, 1.0
    %v458 = vmul.f32 %v350, %v452
    %v459 = vmul.f32 %v458, %v457
    %v460 = vmul.f32 %v459, %v348
    %vm461 = vcmask 1024
    %v462 = vsel %vm461, %v460, 0.0
    %463 = vadd.xlane.f32.xlu0 %v462
    %v464 = vpop.xlane.xlu0 %463
    %v465 = vrot.slane %v464, 4
    %v466 = vadd.f32 %v464, %v465
    %v467 = vrot.slane %v466, 2
    %v468 = vadd.f32 %v466, %v467
    %v469 = vrot.slane %v468, 1
    %v470 = vadd.f32 %v468, %v469
    %s471 = vtos %v470
    %v472 = vld [vmem:[#allocation7] sm:$0xff]
    %v473 = vstv %s471
    %v474 = vadd.f32 %v472, %v473
    %475 = vst [vmem:[#allocation7] sm:$0xff] %v474
    // Predicated region
    $region26: #{tpu_custom_call.1} parent=1 // pred_check
      _
    $region27: #{tpu_custom_call.1} parent=1 // pred_check_branch
      %477 = sbr.rel (0) target = $region29
    $region28: #{tpu_custom_call.1} parent=1 // pred_region
      %s479 = ssub.s32 128, 128
      %480 = vsyncadd [#allocation4], %s479
      %s482 = sshll.u32 [#allocation7], 4
      %s483 = int_to_ptr.vmem [resolvable:$true] %s482
      %485 = dma.vmem_to_hbm [thread:$0]  %s483, 128, %s3, [#allocation4]
    $region29: #{tpu_custom_call.1} parent=1 // pred_fallthru
      _
    // Predicated region
    $region30: #{tpu_custom_call.1} parent=1 // pred_check
      _
    $region31: #{tpu_custom_call.1} parent=1 // pred_check_branch
      %487 = sbr.rel (0) target = $region33
    $region32: #{tpu_custom_call.1} parent=1 // pred_region
      %s489 = ssub.s32 32, 32
      %490 = vsyncadd [#allocation9], %s489
      %s492 = sshll.u32 [#allocation8], 4
      %s493 = int_to_ptr.vmem [resolvable:$true] %s492
      %495 = dma.vmem_to_hbm [thread:$0]  %s493, 32, %s4, [#allocation9]
    $region33: #{tpu_custom_call.1} parent=1 // pred_fallthru
      _
    // Predicated region
    $region34: #{tpu_custom_call.1} parent=1 // pred_check
      _
    $region35: #{tpu_custom_call.1} parent=1 // pred_check_branch
      %497 = sbr.rel (0) target = $region37
    $region36: #{tpu_custom_call.1} parent=1 // pred_region
      %498 = dma.done [#allocation4], 128
    $region37: #{tpu_custom_call.1} parent=1 // pred_fallthru
      _
    // Predicated region
    $region38: #{tpu_custom_call.1} parent=1 // pred_check
      _
    $region39: #{tpu_custom_call.1} parent=1 // pred_check_branch
      %500 = sbr.rel (0) target = $region41
    $region40: #{tpu_custom_call.1} parent=1 // pred_region
      %501 = dma.done [#allocation9], 32
    $region41: #{tpu_custom_call.1} parent=1 // pred_fallthru
      _
    %502 = vsyncpa [#allocation3], 1
    %503 = vsyncpa [#allocation6], 1
    %504 = vsyncpa [#allocation4], 1
    %505 = vsyncpa [#allocation9], 1

</llo_original>
